<compile_context>
chip_gen: v5e
topology: v5e:2x2
jax: 0.10.0
libtpu: 0.0.40
codegen_flags: <defaults>
</compile_context>

<pallas_src>
import functools

import numpy as np
import jax
import jax.numpy as jnp
from jax.experimental import pallas as pl
from jax.experimental.pallas import tpu as pltpu


def _round_up(x, m):
    return ((x + m - 1) // m) * m


# ----------------------------- fused forward Pallas kernel -----------------------------

def _make_kernel(feat, cpad, c_img, c_lid, kb, gs):
    """Builds the fused kernel for static dims.

    feat  : backbone feature channels F
    cpad  : padded decoder output channels
    c_img : image channels, c_lid: lidar channels
    kb    : padded contraction dim of the merged (block-diagonal) backbone matmul
    gs    : lane stride of one output row inside a batch group (= OW + 1)
    """
    k_img, k_lid = 9 * c_img, 9 * c_lid

    def kernel(img_ref, lid_ref, wblk_ref, wd_ref, bd_ref, msk_ref, o_ref):
        # phase slabs: slab[c, n*G + r*gs + q] = padded_input[n, c, 2r + pi, 2q + pj]
        img = img_ref[...].astype(jnp.float32)          # (2, 2, c_img, L)
        lid = lid_ref[...].astype(jnp.float32)          # (2, 2, c_lid, L)
        L = img.shape[-1]

        def shifted(x, delta):                          # value at lane l + delta
            return jnp.roll(x, -delta, axis=-1) if delta else x

        # ---- in-kernel im2col: nine 3x3 taps per backbone via lane shifts -------------
        parts = []
        for src in (img, lid):
            for i in range(3):
                for j in range(3):
                    parts.append(shifted(src[i % 2, j % 2], (i // 2) * gs + (j // 2)))
        parts.append(jnp.ones((1, L), jnp.float32))     # ones row -> folded biases
        pad = kb - (k_img + k_lid + 1)
        if pad:
            parts.append(jnp.zeros((pad, L), jnp.float32))
        cols = jnp.concatenate(parts, axis=0).astype(jnp.bfloat16)     # (kb, L)

        # ---- merged backbones: one block-diag MXU push, bias folded, ReLU in f32 ------
        y = jnp.dot(wblk_ref[...], cols, preferred_element_type=jnp.float32)   # (2F, L)
        y = jnp.maximum(y, 0.0)
        fused = y[:feat] + jnp.float32(0.7) * y[feat:2 * feat]                  # (F, L)

        # ---- decoder 1x1 conv (bf16 operands, f32 accumulate) + pre-broadcast bias ----
        dec = jnp.dot(wd_ref[...], fused.astype(jnp.bfloat16),
                      preferred_element_type=jnp.float32) + bd_ref[...]         # (Cp, L)

        # ---- exact-2x bilinear upsample: shifted-lane weighted adds, edge-clamped -----
        msk = msk_ref[...]
        m_r0, m_r7 = msk[0:1], msk[1:2]                 # first / last real output row
        m_q0, m_q7 = msk[2:3], msk[3:4]                 # first / last real output col

        prev_h = m_r0 * dec + (1.0 - m_r0) * shifted(dec, -gs)   # row oh-1 (clamped)
        next_h = m_r7 * dec + (1.0 - m_r7) * shifted(dec, gs)    # row oh+1 (clamped)
        he = 0.25 * prev_h + 0.75 * dec                          # output rows 2*oh
        ho = 0.75 * dec + 0.25 * next_h                          # output rows 2*oh + 1
        for a, arr in ((0, he), (1, ho)):
            prev_w = m_q0 * arr + (1.0 - m_q0) * shifted(arr, -1)
            next_w = m_q7 * arr + (1.0 - m_q7) * shifted(arr, 1)
            o_ref[2 * a + 0] = 0.25 * prev_w + 0.75 * arr        # output cols 2*ow
            o_ref[2 * a + 1] = 0.75 * arr + 0.25 * next_w        # output cols 2*ow + 1

    return kernel


def fused_forward(img_ph, lid_ph, w_blk, wd, bd_bcast, masks, feat, cpad, gs):
    c_img, c_lid = img_ph.shape[2], lid_ph.shape[2]
    L = img_ph.shape[-1]
    kb = w_blk.shape[1]
    kernel = _make_kernel(feat, cpad, c_img, c_lid, kb, gs)

    operands = (img_ph, lid_ph, w_blk, wd, bd_bcast, masks)
    vmem_spec = pl.BlockSpec(memory_space=pltpu.MemorySpace.VMEM)

    # Derive the scoped-VMEM limit from the actual working set (with headroom), capped
    # below v7x's 64 MiB physical VMEM.
    op_bytes = sum(int(np.prod(o.shape)) * o.dtype.itemsize for o in operands)
    out_bytes = 4 * cpad * L * 4
    vmem_limit = int(min(max(8 * (op_bytes + out_bytes), 4 << 20), 48 << 20))

    return pl.pallas_call(
        kernel,
        out_shape=jax.ShapeDtypeStruct((4, cpad, L), jnp.float32),
        in_specs=[vmem_spec] * len(operands),
        out_specs=vmem_spec,
        compiler_params=pltpu.CompilerParams(vmem_limit_bytes=vmem_limit),
    )(*operands)


# ----------------------------- plain-JAX glue (cheap, shape-static) -----------------------------

@functools.partial(jax.jit, static_argnames=("num_classes",))
def _forward(imgs, lidars, w_blk, wd, bd_vec, num_classes):
    N, _, H, W = imgs.shape
    # TODO(synk): general (non-2x) bilinear target sizes -> separable-matmul upsample path.
    if H % 2 or W % 2:
        raise NotImplementedError("kernel specializes the upsample to the exact-2x case")
    OH, OW = H // 2, W // 2
    gs = OW + 1                              # lane stride of one output row in a batch group
    G = (OH + 1) * (OW + 1)                  # lanes per batch group (keeps 1 dummy row/col)
    L = N * G
    feat = w_blk.shape[0] // 2
    cpad = wd.shape[0]

    def phase(x):
        # stride-2 space-to-depth of the zero-padded input: no data expansion, just a relayout.
        C = x.shape[1]
        xp = jnp.pad(x.astype(jnp.float32), ((0, 0), (0, 0), (1, 1), (1, 1)))
        xr = xp.reshape(N, C, OH + 1, 2, OW + 1, 2)
        ph = jnp.transpose(xr, (3, 5, 1, 0, 2, 4))       # (pi, pj, C, N, OH+1, OW+1)
        return ph.reshape(2, 2, C, L).astype(jnp.bfloat16)

    img_ph = phase(imgs)
    lid_ph = phase(lidars)

    # per-lane edge-clamp masks (static, built in numpy, folded as constants)
    lane = np.arange(L)
    r = (lane % G) // (OW + 1)
    q = lane % (OW + 1)
    masks = jnp.asarray(
        np.stack([r == 0, r == OH - 1, q == 0, q == OW - 1]).astype(np.float32))   # (4, L)

    bd_bcast = jnp.broadcast_to(bd_vec.astype(jnp.float32)[:, None], (cpad, L))

    o = fused_forward(img_ph, lid_ph, w_blk, wd, bd_bcast, masks, feat, cpad, gs)  # (4,Cp,L)
    o = o.reshape(2, 2, cpad, N, OH + 1, OW + 1)[:, :, :, :, :OH, :OW]
    o = jnp.transpose(o, (3, 2, 4, 0, 5, 1)).reshape(N, cpad, H, W)
    return o[:, :num_classes]


# ----------------------------- SingleTaskModel -----------------------------

class SingleTaskModelPallas:
    """backbone(imgs) / backbone_lidar(lidars): 3x3 stride-2 conv + ReLU (one feature level
    each); fusion x1 + 0.7*x2; decoder: 1x1 conv to num_classes; bilinear upsample back to
    the input image size."""

    def __init__(self, img_ch=3, lidar_ch=1, feat_ch=32, num_classes=5, task="semseg"):
        self.task = task
        self.num_classes = num_classes
        key = jax.random.PRNGKey(0)
        k1, k2, k3 = jax.random.split(key, 3)
        # torch-layout parameters (OC, IC, KH, KW)
        self.w_img = 0.1 * jax.random.normal(k1, (feat_ch, img_ch, 3, 3), jnp.float32)
        self.b_img = jnp.linspace(-0.1, 0.1, feat_ch, dtype=jnp.float32)
        self.w_lid = 0.1 * jax.random.normal(k2, (feat_ch, lidar_ch, 3, 3), jnp.float32)
        self.b_lid = jnp.linspace(0.1, -0.1, feat_ch, dtype=jnp.float32)
        self.w_dec = 0.1 * jax.random.normal(k3, (num_classes, feat_ch, 1, 1), jnp.float32)
        self.b_dec = jnp.linspace(-0.05, 0.05, num_classes, dtype=jnp.float32)

        # Merged (block-diagonal) backbone weight, K ordered (tap i, tap j, channel) to
        # match the in-kernel tap assembly; biases folded via the ones row; bf16 operands.
        F = feat_ch
        k_img, k_lid = 9 * img_ch, 9 * lidar_ch
        kb = _round_up(k_img + k_lid + 1, 8)
        zpad = kb - (k_img + k_lid + 1)
        w_img_re = jnp.transpose(self.w_img, (0, 2, 3, 1)).reshape(F, k_img)
        w_lid_re = jnp.transpose(self.w_lid, (0, 2, 3, 1)).reshape(F, k_lid)
        top = jnp.concatenate([w_img_re, jnp.zeros((F, k_lid), jnp.float32),
                               self.b_img[:, None], jnp.zeros((F, zpad), jnp.float32)], axis=1)
        bot = jnp.concatenate([jnp.zeros((F, k_img), jnp.float32), w_lid_re,
                               self.b_lid[:, None], jnp.zeros((F, zpad), jnp.float32)], axis=1)
        self.w_blk = jnp.concatenate([top, bot], axis=0).astype(jnp.bfloat16)   # (2F, kb)

        ocp = _round_up(num_classes, 8)
        self.wd_mat = jnp.pad(self.w_dec.reshape(num_classes, F),
                              ((0, ocp - num_classes), (0, 0))).astype(jnp.bfloat16)
        self.bd_vec = jnp.pad(self.b_dec, (0, ocp - num_classes))

    def __call__(self, x):
        imgs, lidars = x[0], x[1]
        out = _forward(imgs, lidars, self.w_blk, self.wd_mat, self.bd_vec,
                       num_classes=self.num_classes)
        return {self.task: out}


# ----------------------------- reference (pure JAX / XLA, f32) -----------------------------

@functools.lru_cache(maxsize=None)
def _bilinear_matrix_np(out_size, in_size):
    """PyTorch F.interpolate(mode='bilinear', align_corners=False) weights (numpy, cached)."""
    d = np.arange(out_size, dtype=np.float64)
    scale = in_size / out_size
    src = np.maximum((d + 0.5) * scale - 0.5, 0.0)
    i0 = np.minimum(np.floor(src).astype(np.int64), in_size - 1)
    i1 = np.minimum(i0 + 1, in_size - 1)
    w1 = src - i0
    w0 = 1.0 - w1
    A = np.zeros((out_size, in_size), np.float64)
    np.add.at(A, (np.arange(out_size), i0), w0)
    np.add.at(A, (np.arange(out_size), i1), w1)
    return A.astype(np.float32)


def _reference_forward(model, imgs, lidars):
    def conv(x, w, b, stride, pad, relu):
        y = jax.lax.conv_general_dilated(
            x, w, window_strides=(stride, stride), padding=((pad, pad), (pad, pad)),
            dimension_numbers=("NCHW", "OIHW", "NCHW"),
            precision=jax.lax.Precision.HIGHEST)
        y = y + b.reshape(1, -1, 1, 1)
        return jnp.maximum(y, 0.0) if relu else y

    x1 = conv(imgs, model.w_img, model.b_img, 2, 1, True)
    x2 = conv(lidars, model.w_lid, model.b_lid, 2, 1, True)
    f = x1 + 0.7 * x2
    out = conv(f, model.w_dec, model.b_dec, 1, 0, False)
    A_h = jnp.asarray(_bilinear_matrix_np(imgs.shape[-2], out.shape[-2]))
    A_w = jnp.asarray(_bilinear_matrix_np(imgs.shape[-1], out.shape[-1]))
    return jnp.einsum("oh,nchw,pw->ncop", A_h, out, A_w,
                      precision=jax.lax.Precision.HIGHEST)


# ----------------------------- main -----------------------------

if __name__ == "__main__":
    key = jax.random.PRNGKey(0)
    ki, kl = jax.random.split(key)
    imgs = jax.random.normal(ki, (2, 3, 16, 16), jnp.float32)     # NCHW images
    lidars = jax.random.normal(kl, (2, 1, 16, 16), jnp.float32)   # NCHW lidar

    model = SingleTaskModelPallas()
    out = jax.block_until_ready(model((imgs, lidars))[model.task])
    assert out.shape == (2, 5, 16, 16), out.shape

    ref = jax.block_until_ready(_reference_forward(model, imgs, lidars))
    err = float(jnp.max(jnp.abs(out - ref)))
    # bf16 MXU operands (per perf review) vs. the f32 XLA reference -> widened tolerance.
    assert err < 1e-1, err
    print("KERNEL_OK")
</pallas_src>

<mosaic_0001>
module attributes {stable_mosaic.version = 11 : i64} {
  func.func @kernel(%arg0: memref<2x2x3x162xbf16, #tpu.memory_space<vmem>>, %arg1: memref<2x2x1x162xbf16, #tpu.memory_space<vmem>>, %arg2: memref<64x40xbf16, #tpu.memory_space<vmem>>, %arg3: memref<8x32xbf16, #tpu.memory_space<vmem>>, %arg4: memref<8x162xf32, #tpu.memory_space<vmem>>, %arg5: memref<4x162xf32, #tpu.memory_space<vmem>>, %arg6: memref<4x8x162xf32, #tpu.memory_space<vmem>>) attributes {dimension_semantics = [], scalar_prefetch = 0 : i64, scratch_operands = 0 : i64, tpu.core_type = #tpu.core_type<tc>} {
    %c0 = arith.constant 0 : index
    %c0_0 = arith.constant 0 : index
    %c0_1 = arith.constant 0 : index
    %c0_2 = arith.constant 0 : index
    %0 = vector.load %arg0[%c0, %c0_0, %c0_1, %c0_2] : memref<2x2x3x162xbf16, #tpu.memory_space<vmem>>, vector<2x2x3x162xbf16>
    %1 = arith.extf %0 : vector<2x2x3x162xbf16> to vector<2x2x3x162xf32>
    %c0_3 = arith.constant 0 : index
    %c0_4 = arith.constant 0 : index
    %c0_5 = arith.constant 0 : index
    %c0_6 = arith.constant 0 : index
    %2 = vector.load %arg1[%c0_3, %c0_4, %c0_5, %c0_6] : memref<2x2x1x162xbf16, #tpu.memory_space<vmem>>, vector<2x2x1x162xbf16>
    %3 = arith.extf %2 : vector<2x2x1x162xbf16> to vector<2x2x1x162xf32>
    %4 = vector.extract_strided_slice %1 {offsets = [0, 0, 0, 0], sizes = [1, 1, 3, 162], strides = [1, 1, 1, 1]} : vector<2x2x3x162xf32> to vector<1x1x3x162xf32>
    %5 = vector.shape_cast %4 : vector<1x1x3x162xf32> to vector<3x162xf32>
    %6 = vector.extract_strided_slice %1 {offsets = [0, 1, 0, 0], sizes = [1, 1, 3, 162], strides = [1, 1, 1, 1]} : vector<2x2x3x162xf32> to vector<1x1x3x162xf32>
    %7 = vector.shape_cast %6 : vector<1x1x3x162xf32> to vector<3x162xf32>
    %8 = vector.extract_strided_slice %1 {offsets = [0, 0, 0, 0], sizes = [1, 1, 3, 162], strides = [1, 1, 1, 1]} : vector<2x2x3x162xf32> to vector<1x1x3x162xf32>
    %9 = vector.shape_cast %8 : vector<1x1x3x162xf32> to vector<3x162xf32>
    %10 = vector.extract_strided_slice %9 {offsets = [0, 1], sizes = [3, 161], strides = [1, 1]} : vector<3x162xf32> to vector<3x161xf32>
    %11 = vector.extract_strided_slice %9 {offsets = [0, 0], sizes = [3, 1], strides = [1, 1]} : vector<3x162xf32> to vector<3x1xf32>
    %12 = tpu.concatenate %10, %11 in 1 : vector<3x161xf32>, vector<3x1xf32> -> vector<3x162xf32>
    %13 = vector.extract_strided_slice %1 {offsets = [1, 0, 0, 0], sizes = [1, 1, 3, 162], strides = [1, 1, 1, 1]} : vector<2x2x3x162xf32> to vector<1x1x3x162xf32>
    %14 = vector.shape_cast %13 : vector<1x1x3x162xf32> to vector<3x162xf32>
    %15 = vector.extract_strided_slice %1 {offsets = [1, 1, 0, 0], sizes = [1, 1, 3, 162], strides = [1, 1, 1, 1]} : vector<2x2x3x162xf32> to vector<1x1x3x162xf32>
    %16 = vector.shape_cast %15 : vector<1x1x3x162xf32> to vector<3x162xf32>
    %17 = vector.extract_strided_slice %1 {offsets = [1, 0, 0, 0], sizes = [1, 1, 3, 162], strides = [1, 1, 1, 1]} : vector<2x2x3x162xf32> to vector<1x1x3x162xf32>
    %18 = vector.shape_cast %17 : vector<1x1x3x162xf32> to vector<3x162xf32>
    %19 = vector.extract_strided_slice %18 {offsets = [0, 1], sizes = [3, 161], strides = [1, 1]} : vector<3x162xf32> to vector<3x161xf32>
    %20 = vector.extract_strided_slice %18 {offsets = [0, 0], sizes = [3, 1], strides = [1, 1]} : vector<3x162xf32> to vector<3x1xf32>
    %21 = tpu.concatenate %19, %20 in 1 : vector<3x161xf32>, vector<3x1xf32> -> vector<3x162xf32>
    %22 = vector.extract_strided_slice %1 {offsets = [0, 0, 0, 0], sizes = [1, 1, 3, 162], strides = [1, 1, 1, 1]} : vector<2x2x3x162xf32> to vector<1x1x3x162xf32>
    %23 = vector.shape_cast %22 : vector<1x1x3x162xf32> to vector<3x162xf32>
    %24 = vector.extract_strided_slice %23 {offsets = [0, 9], sizes = [3, 153], strides = [1, 1]} : vector<3x162xf32> to vector<3x153xf32>
    %25 = vector.extract_strided_slice %23 {offsets = [0, 0], sizes = [3, 9], strides = [1, 1]} : vector<3x162xf32> to vector<3x9xf32>
    %26 = tpu.concatenate %24, %25 in 1 : vector<3x153xf32>, vector<3x9xf32> -> vector<3x162xf32>
    %27 = vector.extract_strided_slice %1 {offsets = [0, 1, 0, 0], sizes = [1, 1, 3, 162], strides = [1, 1, 1, 1]} : vector<2x2x3x162xf32> to vector<1x1x3x162xf32>
    %28 = vector.shape_cast %27 : vector<1x1x3x162xf32> to vector<3x162xf32>
    %29 = vector.extract_strided_slice %28 {offsets = [0, 9], sizes = [3, 153], strides = [1, 1]} : vector<3x162xf32> to vector<3x153xf32>
    %30 = vector.extract_strided_slice %28 {offsets = [0, 0], sizes = [3, 9], strides = [1, 1]} : vector<3x162xf32> to vector<3x9xf32>
    %31 = tpu.concatenate %29, %30 in 1 : vector<3x153xf32>, vector<3x9xf32> -> vector<3x162xf32>
    %32 = vector.extract_strided_slice %1 {offsets = [0, 0, 0, 0], sizes = [1, 1, 3, 162], strides = [1, 1, 1, 1]} : vector<2x2x3x162xf32> to vector<1x1x3x162xf32>
    %33 = vector.shape_cast %32 : vector<1x1x3x162xf32> to vector<3x162xf32>
    %34 = vector.extract_strided_slice %33 {offsets = [0, 10], sizes = [3, 152], strides = [1, 1]} : vector<3x162xf32> to vector<3x152xf32>
    %35 = vector.extract_strided_slice %33 {offsets = [0, 0], sizes = [3, 10], strides = [1, 1]} : vector<3x162xf32> to vector<3x10xf32>
    %36 = tpu.concatenate %34, %35 in 1 : vector<3x152xf32>, vector<3x10xf32> -> vector<3x162xf32>
    %37 = vector.extract_strided_slice %3 {offsets = [0, 0, 0, 0], sizes = [1, 1, 1, 162], strides = [1, 1, 1, 1]} : vector<2x2x1x162xf32> to vector<1x1x1x162xf32>
    %38 = vector.shape_cast %37 : vector<1x1x1x162xf32> to vector<1x162xf32>
    %39 = vector.extract_strided_slice %3 {offsets = [0, 1, 0, 0], sizes = [1, 1, 1, 162], strides = [1, 1, 1, 1]} : vector<2x2x1x162xf32> to vector<1x1x1x162xf32>
    %40 = vector.shape_cast %39 : vector<1x1x1x162xf32> to vector<1x162xf32>
    %41 = vector.extract_strided_slice %3 {offsets = [0, 0, 0, 0], sizes = [1, 1, 1, 162], strides = [1, 1, 1, 1]} : vector<2x2x1x162xf32> to vector<1x1x1x162xf32>
    %42 = vector.shape_cast %41 : vector<1x1x1x162xf32> to vector<1x162xf32>
    %43 = vector.extract_strided_slice %42 {offsets = [0, 1], sizes = [1, 161], strides = [1, 1]} : vector<1x162xf32> to vector<1x161xf32>
    %44 = vector.extract_strided_slice %42 {offsets = [0, 0], sizes = [1, 1], strides = [1, 1]} : vector<1x162xf32> to vector<1x1xf32>
    %45 = tpu.concatenate %43, %44 in 1 : vector<1x161xf32>, vector<1x1xf32> -> vector<1x162xf32>
    %46 = vector.extract_strided_slice %3 {offsets = [1, 0, 0, 0], sizes = [1, 1, 1, 162], strides = [1, 1, 1, 1]} : vector<2x2x1x162xf32> to vector<1x1x1x162xf32>
    %47 = vector.shape_cast %46 : vector<1x1x1x162xf32> to vector<1x162xf32>
    %48 = vector.extract_strided_slice %3 {offsets = [1, 1, 0, 0], sizes = [1, 1, 1, 162], strides = [1, 1, 1, 1]} : vector<2x2x1x162xf32> to vector<1x1x1x162xf32>
    %49 = vector.shape_cast %48 : vector<1x1x1x162xf32> to vector<1x162xf32>
    %50 = vector.extract_strided_slice %3 {offsets = [1, 0, 0, 0], sizes = [1, 1, 1, 162], strides = [1, 1, 1, 1]} : vector<2x2x1x162xf32> to vector<1x1x1x162xf32>
    %51 = vector.shape_cast %50 : vector<1x1x1x162xf32> to vector<1x162xf32>
    %52 = vector.extract_strided_slice %51 {offsets = [0, 1], sizes = [1, 161], strides = [1, 1]} : vector<1x162xf32> to vector<1x161xf32>
    %53 = vector.extract_strided_slice %51 {offsets = [0, 0], sizes = [1, 1], strides = [1, 1]} : vector<1x162xf32> to vector<1x1xf32>
    %54 = tpu.concatenate %52, %53 in 1 : vector<1x161xf32>, vector<1x1xf32> -> vector<1x162xf32>
    %55 = vector.extract_strided_slice %3 {offsets = [0, 0, 0, 0], sizes = [1, 1, 1, 162], strides = [1, 1, 1, 1]} : vector<2x2x1x162xf32> to vector<1x1x1x162xf32>
    %56 = vector.shape_cast %55 : vector<1x1x1x162xf32> to vector<1x162xf32>
    %57 = vector.extract_strided_slice %56 {offsets = [0, 9], sizes = [1, 153], strides = [1, 1]} : vector<1x162xf32> to vector<1x153xf32>
    %58 = vector.extract_strided_slice %56 {offsets = [0, 0], sizes = [1, 9], strides = [1, 1]} : vector<1x162xf32> to vector<1x9xf32>
    %59 = tpu.concatenate %57, %58 in 1 : vector<1x153xf32>, vector<1x9xf32> -> vector<1x162xf32>
    %60 = vector.extract_strided_slice %3 {offsets = [0, 1, 0, 0], sizes = [1, 1, 1, 162], strides = [1, 1, 1, 1]} : vector<2x2x1x162xf32> to vector<1x1x1x162xf32>
    %61 = vector.shape_cast %60 : vector<1x1x1x162xf32> to vector<1x162xf32>
    %62 = vector.extract_strided_slice %61 {offsets = [0, 9], sizes = [1, 153], strides = [1, 1]} : vector<1x162xf32> to vector<1x153xf32>
    %63 = vector.extract_strided_slice %61 {offsets = [0, 0], sizes = [1, 9], strides = [1, 1]} : vector<1x162xf32> to vector<1x9xf32>
    %64 = tpu.concatenate %62, %63 in 1 : vector<1x153xf32>, vector<1x9xf32> -> vector<1x162xf32>
    %65 = vector.extract_strided_slice %3 {offsets = [0, 0, 0, 0], sizes = [1, 1, 1, 162], strides = [1, 1, 1, 1]} : vector<2x2x1x162xf32> to vector<1x1x1x162xf32>
    %66 = vector.shape_cast %65 : vector<1x1x1x162xf32> to vector<1x162xf32>
    %67 = vector.extract_strided_slice %66 {offsets = [0, 10], sizes = [1, 152], strides = [1, 1]} : vector<1x162xf32> to vector<1x152xf32>
    %68 = vector.extract_strided_slice %66 {offsets = [0, 0], sizes = [1, 10], strides = [1, 1]} : vector<1x162xf32> to vector<1x10xf32>
    %69 = tpu.concatenate %67, %68 in 1 : vector<1x152xf32>, vector<1x10xf32> -> vector<1x162xf32>
    %cst = arith.constant 1.000000e+00 : f32
    %70 = vector.broadcast %cst : f32 to vector<1x162xf32>
    %cst_7 = arith.constant 0.000000e+00 : f32
    %71 = vector.broadcast %cst_7 : f32 to vector<3x162xf32>
    %72 = tpu.concatenate %5, %7, %12, %14, %16, %21, %26, %31, %36, %38, %40, %45, %47, %49, %54, %59 in 0 : vector<3x162xf32>, vector<3x162xf32>, vector<3x162xf32>, vector<3x162xf32>, vector<3x162xf32>, vector<3x162xf32>, vector<3x162xf32>, vector<3x162xf32>, vector<3x162xf32>, vector<1x162xf32>, vector<1x162xf32>, vector<1x162xf32>, vector<1x162xf32>, vector<1x162xf32>, vector<1x162xf32>, vector<1x162xf32> -> vector<34x162xf32>
    %73 = tpu.concatenate %64, %69, %70, %71 in 0 : vector<1x162xf32>, vector<1x162xf32>, vector<1x162xf32>, vector<3x162xf32> -> vector<6x162xf32>
    %74 = tpu.concatenate %72, %73 in 0 : vector<34x162xf32>, vector<6x162xf32> -> vector<40x162xf32>
    %75 = arith.truncf %74 : vector<40x162xf32> to vector<40x162xbf16>
    %c0_8 = arith.constant 0 : index
    %c0_9 = arith.constant 0 : index
    %76 = vector.load %arg2[%c0_8, %c0_9] : memref<64x40xbf16, #tpu.memory_space<vmem>>, vector<64x40xbf16>
    %cst_10 = arith.constant dense<0.000000e+00> : vector<64x162xf32>
    %77 = tpu.matmul %76, %75, %cst_10 {dimension_numbers = #tpu.dot_dimension_numbers<[1], [0], [0], [1], [0, 0, 1, 1], [], []>} : vector<64x40xbf16>, vector<40x162xbf16>, vector<64x162xf32> -> vector<64x162xf32>
    %cst_11 = arith.constant 0.000000e+00 : f32
    %78 = vector.broadcast %cst_11 : f32 to vector<64x162xf32>
    %79 = arith.maximumf %77, %78 : vector<64x162xf32>
    %80 = vector.extract_strided_slice %79 {offsets = [0, 0], sizes = [32, 162], strides = [1, 1]} : vector<64x162xf32> to vector<32x162xf32>
    %81 = vector.extract_strided_slice %79 {offsets = [32, 0], sizes = [32, 162], strides = [1, 1]} : vector<64x162xf32> to vector<32x162xf32>
    %cst_12 = arith.constant 0.699999988 : f32
    %82 = vector.broadcast %cst_12 : f32 to vector<32x162xf32>
    %83 = arith.mulf %82, %81 : vector<32x162xf32>
    %84 = arith.addf %80, %83 : vector<32x162xf32>
    %c0_13 = arith.constant 0 : index
    %c0_14 = arith.constant 0 : index
    %85 = vector.load %arg3[%c0_13, %c0_14] : memref<8x32xbf16, #tpu.memory_space<vmem>>, vector<8x32xbf16>
    %86 = arith.truncf %84 : vector<32x162xf32> to vector<32x162xbf16>
    %cst_15 = arith.constant dense<0.000000e+00> : vector<8x162xf32>
    %87 = tpu.matmul %85, %86, %cst_15 {dimension_numbers = #tpu.dot_dimension_numbers<[1], [0], [0], [1], [0, 0, 1, 1], [], []>} : vector<8x32xbf16>, vector<32x162xbf16>, vector<8x162xf32> -> vector<8x162xf32>
    %c0_16 = arith.constant 0 : index
    %c0_17 = arith.constant 0 : index
    %88 = vector.load %arg4[%c0_16, %c0_17] : memref<8x162xf32, #tpu.memory_space<vmem>>, vector<8x162xf32>
    %89 = arith.addf %87, %88 : vector<8x162xf32>
    %c0_18 = arith.constant 0 : index
    %c0_19 = arith.constant 0 : index
    %90 = vector.load %arg5[%c0_18, %c0_19] : memref<4x162xf32, #tpu.memory_space<vmem>>, vector<4x162xf32>
    %91 = vector.extract_strided_slice %90 {offsets = [0, 0], sizes = [1, 162], strides = [1, 1]} : vector<4x162xf32> to vector<1x162xf32>
    %92 = vector.extract_strided_slice %90 {offsets = [1, 0], sizes = [1, 162], strides = [1, 1]} : vector<4x162xf32> to vector<1x162xf32>
    %93 = vector.extract_strided_slice %90 {offsets = [2, 0], sizes = [1, 162], strides = [1, 1]} : vector<4x162xf32> to vector<1x162xf32>
    %94 = vector.extract_strided_slice %90 {offsets = [3, 0], sizes = [1, 162], strides = [1, 1]} : vector<4x162xf32> to vector<1x162xf32>
    %95 = vector.broadcast %91 : vector<1x162xf32> to vector<8x162xf32>
    %96 = arith.mulf %95, %89 : vector<8x162xf32>
    %cst_20 = arith.constant 1.000000e+00 : f32
    %97 = vector.broadcast %cst_20 : f32 to vector<1x162xf32>
    %98 = arith.subf %97, %91 : vector<1x162xf32>
    %99 = vector.extract_strided_slice %89 {offsets = [0, 153], sizes = [8, 9], strides = [1, 1]} : vector<8x162xf32> to vector<8x9xf32>
    %100 = vector.extract_strided_slice %89 {offsets = [0, 0], sizes = [8, 153], strides = [1, 1]} : vector<8x162xf32> to vector<8x153xf32>
    %101 = tpu.concatenate %99, %100 in 1 : vector<8x9xf32>, vector<8x153xf32> -> vector<8x162xf32>
    %102 = vector.broadcast %98 : vector<1x162xf32> to vector<8x162xf32>
    %103 = arith.mulf %102, %101 : vector<8x162xf32>
    %104 = arith.addf %96, %103 : vector<8x162xf32>
    %105 = vector.broadcast %92 : vector<1x162xf32> to vector<8x162xf32>
    %106 = arith.mulf %105, %89 : vector<8x162xf32>
    %cst_21 = arith.constant 1.000000e+00 : f32
    %107 = vector.broadcast %cst_21 : f32 to vector<1x162xf32>
    %108 = arith.subf %107, %92 : vector<1x162xf32>
    %109 = vector.extract_strided_slice %89 {offsets = [0, 9], sizes = [8, 153], strides = [1, 1]} : vector<8x162xf32> to vector<8x153xf32>
    %110 = vector.extract_strided_slice %89 {offsets = [0, 0], sizes = [8, 9], strides = [1, 1]} : vector<8x162xf32> to vector<8x9xf32>
    %111 = tpu.concatenate %109, %110 in 1 : vector<8x153xf32>, vector<8x9xf32> -> vector<8x162xf32>
    %112 = vector.broadcast %108 : vector<1x162xf32> to vector<8x162xf32>
    %113 = arith.mulf %112, %111 : vector<8x162xf32>
    %114 = arith.addf %106, %113 : vector<8x162xf32>
    %cst_22 = arith.constant 2.500000e-01 : f32
    %115 = vector.broadcast %cst_22 : f32 to vector<8x162xf32>
    %116 = arith.mulf %115, %104 : vector<8x162xf32>
    %cst_23 = arith.constant 7.500000e-01 : f32
    %117 = vector.broadcast %cst_23 : f32 to vector<8x162xf32>
    %118 = arith.mulf %117, %89 : vector<8x162xf32>
    %119 = arith.addf %116, %118 : vector<8x162xf32>
    %cst_24 = arith.constant 7.500000e-01 : f32
    %120 = vector.broadcast %cst_24 : f32 to vector<8x162xf32>
    %121 = arith.mulf %120, %89 : vector<8x162xf32>
    %cst_25 = arith.constant 2.500000e-01 : f32
    %122 = vector.broadcast %cst_25 : f32 to vector<8x162xf32>
    %123 = arith.mulf %122, %114 : vector<8x162xf32>
    %124 = arith.addf %121, %123 : vector<8x162xf32>
    %125 = vector.broadcast %93 : vector<1x162xf32> to vector<8x162xf32>
    %126 = arith.mulf %125, %119 : vector<8x162xf32>
    %cst_26 = arith.constant 1.000000e+00 : f32
    %127 = vector.broadcast %cst_26 : f32 to vector<1x162xf32>
    %128 = arith.subf %127, %93 : vector<1x162xf32>
    %129 = vector.extract_strided_slice %119 {offsets = [0, 161], sizes = [8, 1], strides = [1, 1]} : vector<8x162xf32> to vector<8x1xf32>
    %130 = vector.extract_strided_slice %119 {offsets = [0, 0], sizes = [8, 161], strides = [1, 1]} : vector<8x162xf32> to vector<8x161xf32>
    %131 = tpu.concatenate %129, %130 in 1 : vector<8x1xf32>, vector<8x161xf32> -> vector<8x162xf32>
    %132 = vector.broadcast %128 : vector<1x162xf32> to vector<8x162xf32>
    %133 = arith.mulf %132, %131 : vector<8x162xf32>
    %134 = arith.addf %126, %133 : vector<8x162xf32>
    %135 = vector.broadcast %94 : vector<1x162xf32> to vector<8x162xf32>
    %136 = arith.mulf %135, %119 : vector<8x162xf32>
    %cst_27 = arith.constant 1.000000e+00 : f32
    %137 = vector.broadcast %cst_27 : f32 to vector<1x162xf32>
    %138 = arith.subf %137, %94 : vector<1x162xf32>
    %139 = vector.extract_strided_slice %119 {offsets = [0, 1], sizes = [8, 161], strides = [1, 1]} : vector<8x162xf32> to vector<8x161xf32>
    %140 = vector.extract_strided_slice %119 {offsets = [0, 0], sizes = [8, 1], strides = [1, 1]} : vector<8x162xf32> to vector<8x1xf32>
    %141 = tpu.concatenate %139, %140 in 1 : vector<8x161xf32>, vector<8x1xf32> -> vector<8x162xf32>
    %142 = vector.broadcast %138 : vector<1x162xf32> to vector<8x162xf32>
    %143 = arith.mulf %142, %141 : vector<8x162xf32>
    %144 = arith.addf %136, %143 : vector<8x162xf32>
    %cst_28 = arith.constant 2.500000e-01 : f32
    %145 = vector.broadcast %cst_28 : f32 to vector<8x162xf32>
    %146 = arith.mulf %145, %134 : vector<8x162xf32>
    %cst_29 = arith.constant 7.500000e-01 : f32
    %147 = vector.broadcast %cst_29 : f32 to vector<8x162xf32>
    %148 = arith.mulf %147, %119 : vector<8x162xf32>
    %149 = arith.addf %146, %148 : vector<8x162xf32>
    %c0_30 = arith.constant 0 : index
    %c0_31 = arith.constant 0 : index
    %c0_32 = arith.constant 0 : index
    %150 = vector.load %arg6[%c0_30, %c0_31, %c0_32] : memref<4x8x162xf32, #tpu.memory_space<vmem>>, vector<1x8x162xf32>
    %151 = vector.shape_cast %150 : vector<1x8x162xf32> to vector<8x162xf32>
    %152 = vector.shape_cast %149 : vector<8x162xf32> to vector<1x8x162xf32>
    tpu.vector_store %arg6[%c0_30, %c0_31, %c0_32], %152 {strides = array<i32>} : memref<4x8x162xf32, #tpu.memory_space<vmem>>, vector<1x8x162xf32>,
    %cst_33 = arith.constant 7.500000e-01 : f32
    %153 = vector.broadcast %cst_33 : f32 to vector<8x162xf32>
    %154 = arith.mulf %153, %119 : vector<8x162xf32>
    %cst_34 = arith.constant 2.500000e-01 : f32
    %155 = vector.broadcast %cst_34 : f32 to vector<8x162xf32>
    %156 = arith.mulf %155, %144 : vector<8x162xf32>
    %157 = arith.addf %154, %156 : vector<8x162xf32>
    %c1 = arith.constant 1 : index
    %c0_35 = arith.constant 0 : index
    %c0_36 = arith.constant 0 : index
    %158 = vector.load %arg6[%c1, %c0_35, %c0_36] : memref<4x8x162xf32, #tpu.memory_space<vmem>>, vector<1x8x162xf32>
    %159 = vector.shape_cast %158 : vector<1x8x162xf32> to vector<8x162xf32>
    %160 = vector.shape_cast %157 : vector<8x162xf32> to vector<1x8x162xf32>
    tpu.vector_store %arg6[%c1, %c0_35, %c0_36], %160 {strides = array<i32>} : memref<4x8x162xf32, #tpu.memory_space<vmem>>, vector<1x8x162xf32>,
    %161 = vector.broadcast %93 : vector<1x162xf32> to vector<8x162xf32>
    %162 = arith.mulf %161, %124 : vector<8x162xf32>
    %cst_37 = arith.constant 1.000000e+00 : f32
    %163 = vector.broadcast %cst_37 : f32 to vector<1x162xf32>
    %164 = arith.subf %163, %93 : vector<1x162xf32>
    %165 = vector.extract_strided_slice %124 {offsets = [0, 161], sizes = [8, 1], strides = [1, 1]} : vector<8x162xf32> to vector<8x1xf32>
    %166 = vector.extract_strided_slice %124 {offsets = [0, 0], sizes = [8, 161], strides = [1, 1]} : vector<8x162xf32> to vector<8x161xf32>
    %167 = tpu.concatenate %165, %166 in 1 : vector<8x1xf32>, vector<8x161xf32> -> vector<8x162xf32>
    %168 = vector.broadcast %164 : vector<1x162xf32> to vector<8x162xf32>
    %169 = arith.mulf %168, %167 : vector<8x162xf32>
    %170 = arith.addf %162, %169 : vector<8x162xf32>
    %171 = vector.broadcast %94 : vector<1x162xf32> to vector<8x162xf32>
    %172 = arith.mulf %171, %124 : vector<8x162xf32>
    %cst_38 = arith.constant 1.000000e+00 : f32
    %173 = vector.broadcast %cst_38 : f32 to vector<1x162xf32>
    %174 = arith.subf %173, %94 : vector<1x162xf32>
    %175 = vector.extract_strided_slice %124 {offsets = [0, 1], sizes = [8, 161], strides = [1, 1]} : vector<8x162xf32> to vector<8x161xf32>
    %176 = vector.extract_strided_slice %124 {offsets = [0, 0], sizes = [8, 1], strides = [1, 1]} : vector<8x162xf32> to vector<8x1xf32>
    %177 = tpu.concatenate %175, %176 in 1 : vector<8x161xf32>, vector<8x1xf32> -> vector<8x162xf32>
    %178 = vector.broadcast %174 : vector<1x162xf32> to vector<8x162xf32>
    %179 = arith.mulf %178, %177 : vector<8x162xf32>
    %180 = arith.addf %172, %179 : vector<8x162xf32>
    %cst_39 = arith.constant 2.500000e-01 : f32
    %181 = vector.broadcast %cst_39 : f32 to vector<8x162xf32>
    %182 = arith.mulf %181, %170 : vector<8x162xf32>
    %cst_40 = arith.constant 7.500000e-01 : f32
    %183 = vector.broadcast %cst_40 : f32 to vector<8x162xf32>
    %184 = arith.mulf %183, %124 : vector<8x162xf32>
    %185 = arith.addf %182, %184 : vector<8x162xf32>
    %c2 = arith.constant 2 : index
    %c0_41 = arith.constant 0 : index
    %c0_42 = arith.constant 0 : index
    %186 = vector.load %arg6[%c2, %c0_41, %c0_42] : memref<4x8x162xf32, #tpu.memory_space<vmem>>, vector<1x8x162xf32>
    %187 = vector.shape_cast %186 : vector<1x8x162xf32> to vector<8x162xf32>
    %188 = vector.shape_cast %185 : vector<8x162xf32> to vector<1x8x162xf32>
    tpu.vector_store %arg6[%c2, %c0_41, %c0_42], %188 {strides = array<i32>} : memref<4x8x162xf32, #tpu.memory_space<vmem>>, vector<1x8x162xf32>,
    %cst_43 = arith.constant 7.500000e-01 : f32
    %189 = vector.broadcast %cst_43 : f32 to vector<8x162xf32>
    %190 = arith.mulf %189, %124 : vector<8x162xf32>
    %cst_44 = arith.constant 2.500000e-01 : f32
    %191 = vector.broadcast %cst_44 : f32 to vector<8x162xf32>
    %192 = arith.mulf %191, %180 : vector<8x162xf32>
    %193 = arith.addf %190, %192 : vector<8x162xf32>
    %c3 = arith.constant 3 : index
    %c0_45 = arith.constant 0 : index
    %c0_46 = arith.constant 0 : index
    %194 = vector.load %arg6[%c3, %c0_45, %c0_46] : memref<4x8x162xf32, #tpu.memory_space<vmem>>, vector<1x8x162xf32>
    %195 = vector.shape_cast %194 : vector<1x8x162xf32> to vector<8x162xf32>
    %196 = vector.shape_cast %193 : vector<8x162xf32> to vector<1x8x162xf32>
    tpu.vector_store %arg6[%c3, %c0_45, %c0_46], %196 {strides = array<i32>} : memref<4x8x162xf32, #tpu.memory_space<vmem>>, vector<1x8x162xf32>,
    return
  }
}

</mosaic_0001>

<llo_original>
// kernel: _forward.1
$region0: #{_forward.1}
  #allocation0 [shape = 'u32[]', space=smem, size = 0x4, offset = 0x4, fixed_abs, tag = 'smem constant byte address 0x4 - core index']
  #allocation1 [shape = 'u32[72,128]{1,0:T(1,128)}', space=vmem, size = 0x9000, scoped, tag = 'internal scratch']
  %s0 = inlined_call_operand.vmem [shape: bf16[2,2,3,162], index: 0, kind: input, shape index: {}]
  %s1 = inlined_call_operand.vmem [shape: bf16[2,2,1,162], index: 1, kind: input, shape index: {}]
  %s2 = inlined_call_operand.vmem [shape: bf16[64,40], index: 2, kind: input, shape index: {}]
  %s3 = inlined_call_operand.vmem [shape: bf16[8,32], index: 3, kind: input, shape index: {}]
  %s4 = inlined_call_operand.vmem [shape: f32[8,162], index: 4, kind: input, shape index: {}]
  %s5 = inlined_call_operand.vmem [shape: f32[4,162], index: 5, kind: input, shape index: {}]
  %s6 = inlined_call_operand.vmem [shape: f32[4,8,162], index: 6, kind: output, shape index: {}]
  %s7 = sld [smem:[#allocation0]]
  $region34: #{_forward.1} parent=0
    _
  %s9 = ssub.s32 1, %s7
  %s10 = scalar_select 0, %s9, %s7
  // Predicated region
  $region2: #{_forward.1} parent=0 // pred_check
    _
  $region3: #{_forward.1} parent=0 // pred_check_branch
    %12 = sbr.rel (0) target = $region5
  $region4: #{_forward.1} parent=0 // pred_region
    _
  $region5: #{_forward.1} parent=0 // pred_fallthru
    _
  // Predicated region
  $region6: #{_forward.1} parent=0 // pred_check
    _
  $region7: #{_forward.1} parent=0 // pred_check_branch
    %14 = sbr.rel (0) target = $region9
  $region8: #{_forward.1} parent=0 // pred_region
    _
  $region9: #{_forward.1} parent=0 // pred_fallthru
    _
  // Predicated region
  $region10: #{_forward.1} parent=0 // pred_check
    _
  $region11: #{_forward.1} parent=0 // pred_check_branch
    %16 = sbr.rel (0) target = $region13
  $region12: #{_forward.1} parent=0 // pred_region
    _
  $region13: #{_forward.1} parent=0 // pred_fallthru
    _
  // Predicated region
  $region14: #{_forward.1} parent=0 // pred_check
    _
  $region15: #{_forward.1} parent=0 // pred_check_branch
    %18 = sbr.rel (0) target = $region17
  $region16: #{_forward.1} parent=0 // pred_region
    _
  $region17: #{_forward.1} parent=0 // pred_fallthru
    _
  // Predicated region
  $region18: #{_forward.1} parent=0 // pred_check
    _
  $region19: #{_forward.1} parent=0 // pred_check_branch
    %20 = sbr.rel (0) target = $region21
  $region20: #{_forward.1} parent=0 // pred_region
    _
  $region21: #{_forward.1} parent=0 // pred_fallthru
    _
  // Predicated region
  $region22: #{_forward.1} parent=0 // pred_check
    _
  $region23: #{_forward.1} parent=0 // pred_check_branch
    %22 = sbr.rel (0) target = $region25
  $region24: #{_forward.1} parent=0 // pred_region
    _
  $region25: #{_forward.1} parent=0 // pred_fallthru
    _
  %v24 = vld [vmem:[%s0] sm:$0xf]
  %v25 = vld [vmem:[%s0 + $0x4] sm:$0xf]
  %v26 = vld [vmem:[%s0 + $0x8] sm:$0xf]
  %v27 = vld [vmem:[%s0 + $0xc] sm:$0xf]
  %v28 = vunpack.c.l.bf16 %v24
  %v29 = vunpack.c.l.bf16 %v25
  %v30 = vunpack.c.l.bf16 %v26
  %v31 = vunpack.c.l.bf16 %v27
  %v32 = vld [vmem:[%s1] sm:$0x3]
  %v33 = vld [vmem:[%s1 + $0x2] sm:$0x3]
  %v34 = vld [vmem:[%s1 + $0x4] sm:$0x3]
  %v35 = vld [vmem:[%s1 + $0x6] sm:$0x3]
  %v36 = vunpack.c.l.bf16 %v32
  %v37 = vunpack.c.l.bf16 %v33
  %v38 = vunpack.c.l.bf16 %v34
  %v39 = vunpack.c.l.bf16 %v35
  %41 = vst [vmem:[#allocation1] ss:$2 sm:$0xff] %v28
  %v42 = vld.sshfl [vmem:[#allocation1] sm:$0xff pattern:$0x75316420]
  %v43 = vld.sshfl [vmem:[#allocation1 + $0x8] sm:$0xff pattern:$0x75316420]
  %44 = vrot.lane.b32.xlu0 %v42, 127
  %v45 = vpop.permute.xlu0 %44
  %46 = vrot.lane.b32.xlu0 %v43, 127
  %v47 = vpop.permute.xlu0 %46
  %vm48 = vcmask 1039360
  %v49 = vsel %vm48, %v45, %v47
  %51 = vst [vmem:[#allocation1] ss:$2 sm:$0xff] %v28
  %v52 = vld.sshfl [vmem:[#allocation1] sm:$0xff pattern:$0x75316420]
  %53 = vrot.lane.b32.xlu0 %v52, 33
  %v54 = vpop.permute.xlu0 %53
  %vm56 = vcmask 269312
  %v57 = vsel %vm56, %v47, %v54
  %59 = vst [vmem:[#allocation1] ss:$2 sm:$0xff] %v30
  %v60 = vld.sshfl [vmem:[#allocation1] sm:$0xff pattern:$0x75316420]
  %v61 = vld.sshfl [vmem:[#allocation1 + $0x8] sm:$0xff pattern:$0x75316420]
  %62 = vrot.lane.b32.xlu0 %v60, 127
  %v63 = vpop.permute.xlu0 %62
  %64 = vrot.lane.b32.xlu0 %v61, 127
  %v65 = vpop.permute.xlu0 %64
  %v66 = vsel %vm48, %v63, %v65
  %68 = vst [vmem:[#allocation1] ss:$2 sm:$0xff] %v30
  %v69 = vld.sshfl [vmem:[#allocation1] sm:$0xff pattern:$0x75316420]
  %70 = vrot.lane.b32.xlu0 %v69, 33
  %v71 = vpop.permute.xlu0 %70
  %v73 = vsel %vm56, %v65, %v71
  %74 = vst [vmem:[#allocation1] ss:$2 sm:$0xff] %v28
  %v75 = vld.sshfl [vmem:[#allocation1] sm:$0xff pattern:$0x75316420]
  %v76 = vld.sshfl [vmem:[#allocation1 + $0x8] sm:$0xff pattern:$0x75316420]
  %77 = vrot.lane.b32.xlu0 %v75, 119
  %v78 = vpop.permute.xlu0 %77
  %79 = vrot.lane.b32.xlu0 %v76, 119
  %v80 = vpop.permute.xlu0 %79
  %vm81 = vcmask 973824
  %v82 = vsel %vm81, %v78, %v80
  %84 = vst [vmem:[#allocation1] ss:$2 sm:$0xff] %v28
  %v85 = vld.sshfl [vmem:[#allocation1] sm:$0xff pattern:$0x75316420]
  %86 = vrot.lane.b32.xlu0 %v85, 25
  %v87 = vpop.permute.xlu0 %86
  %vm89 = vcmask 203776
  %v90 = vsel %vm89, %v80, %v87
  %92 = vst [vmem:[#allocation1] ss:$2 sm:$0xff] %v29
  %v93 = vld.sshfl [vmem:[#allocation1] sm:$0xff pattern:$0x75316420]
  %v94 = vld.sshfl [vmem:[#allocation1 + $0x8] sm:$0xff pattern:$0x75316420]
  %95 = vrot.lane.b32.xlu0 %v93, 119
  %v96 = vpop.permute.xlu0 %95
  %97 = vrot.lane.b32.xlu0 %v94, 119
  %v98 = vpop.permute.xlu0 %97
  %v99 = vsel %vm81, %v96, %v98
  %101 = vst [vmem:[#allocation1] ss:$2 sm:$0xff] %v29
  %v102 = vld.sshfl [vmem:[#allocation1] sm:$0xff pattern:$0x75316420]
  %103 = vrot.lane.b32.xlu0 %v102, 25
  %v104 = vpop.permute.xlu0 %103
  %v106 = vsel %vm89, %v98, %v104
  %107 = vst [vmem:[#allocation1] ss:$2 sm:$0xff] %v28
  %v108 = vld.sshfl [vmem:[#allocation1] sm:$0xff pattern:$0x75316420]
  %v109 = vld.sshfl [vmem:[#allocation1 + $0x8] sm:$0xff pattern:$0x75316420]
  %110 = vrot.lane.b32.xlu0 %v108, 118
  %v111 = vpop.permute.xlu0 %110
  %112 = vrot.lane.b32.xlu0 %v109, 118
  %v113 = vpop.permute.xlu0 %112
  %vm114 = vcmask 965632
  %v115 = vsel %vm114, %v111, %v113
  %118 = vst [vmem:[#allocation1] ss:$2 sm:$0xff] %v28
  %v119 = vld.sshfl [vmem:[#allocation1] sm:$0xff pattern:$0x75316420]
  %120 = vrot.lane.b32.xlu0 %v119, 24
  %v121 = vpop.permute.xlu0 %120
  %vm123 = vcmask 195584
  %v124 = vsel %vm123, %v113, %v121
  %v126 = vperm.slane %v36, 0
  %v127 = vperm.slane %v36, 2
  %128 = vrot.lane.b32.xlu0 %v126, 127
  %v129 = vpop.permute.xlu0 %128
  %130 = vrot.lane.b32.xlu0 %v127, 127
  %v131 = vpop.permute.xlu0 %130
  %v132 = vsel %vm48, %v129, %v131
  %134 = vrot.lane.b32.xlu0 %v126, 33
  %v135 = vpop.permute.xlu0 %134
  %v137 = vsel %vm56, %v131, %v135
  %v139 = vperm.slane %v38, 0
  %v140 = vperm.slane %v38, 2
  %141 = vrot.lane.b32.xlu0 %v139, 127
  %v142 = vpop.permute.xlu0 %141
  %143 = vrot.lane.b32.xlu0 %v140, 127
  %v144 = vpop.permute.xlu0 %143
  %v145 = vsel %vm48, %v142, %v144
  %148 = vrot.lane.b32.xlu0 %v139, 33
  %v149 = vpop.permute.xlu0 %148
  %v151 = vsel %vm56, %v144, %v149
  %152 = vrot.lane.b32.xlu0 %v126, 119
  %v153 = vpop.permute.xlu0 %152
  %154 = vrot.lane.b32.xlu0 %v127, 119
  %v155 = vpop.permute.xlu0 %154
  %v156 = vsel %vm81, %v153, %v155
  %158 = vrot.lane.b32.xlu0 %v126, 25
  %v159 = vpop.permute.xlu0 %158
  %v161 = vsel %vm89, %v155, %v159
  %v163 = vperm.slane %v37, 0
  %v164 = vperm.slane %v37, 2
  %165 = vrot.lane.b32.xlu0 %v163, 119
  %v166 = vpop.permute.xlu0 %165
  %167 = vrot.lane.b32.xlu0 %v164, 119
  %v168 = vpop.permute.xlu0 %167
  %v169 = vsel %vm81, %v166, %v168
  %172 = vrot.lane.b32.xlu0 %v163, 25
  %v173 = vpop.permute.xlu0 %172
  %v175 = vsel %vm89, %v168, %v173
  %176 = vrot.lane.b32.xlu0 %v126, 118
  %v177 = vpop.permute.xlu0 %176
  %178 = vrot.lane.b32.xlu0 %v127, 118
  %v179 = vpop.permute.xlu0 %178
  %v180 = vsel %vm114, %v177, %v179
  %182 = vrot.lane.b32.xlu0 %v126, 24
  %v183 = vpop.permute.xlu0 %182
  %v185 = vsel %vm123, %v179, %v183
  %186 = vst [vmem:[#allocation1] ss:$2 sm:$0xff] %v28
  %v187 = vld.sshfl [vmem:[#allocation1] sm:$0xff pattern:$0x75316420]
  %v188 = vld.sshfl [vmem:[#allocation1 + $0x8] sm:$0xff pattern:$0x75316420]
  %191 = vst [vmem:[#allocation1] ss:$2 sm:$0xff] %v29
  %v192 = vld.sshfl [vmem:[#allocation1] sm:$0xff pattern:$0x75316420]
  %v193 = vld.sshfl [vmem:[#allocation1 + $0x8] sm:$0xff pattern:$0x75316420]
  %v194 = vrot.slane %v192, 5
  %v195 = vrot.slane %v193, 5
  %v199 = vrot.slane %v49, 2
  %v200 = vrot.slane %v57, 2
  %203 = vst [vmem:[#allocation1] ss:$2 sm:$0xff] %v30
  %v204 = vld.sshfl [vmem:[#allocation1] sm:$0xff pattern:$0x75316420]
  %v205 = vld.sshfl [vmem:[#allocation1 + $0x8] sm:$0xff pattern:$0x75316420]
  %v206 = vrot.slane %v204, 7
  %v207 = vrot.slane %v205, 7
  %s211 = scalar_lea.vmem [#allocation1], 1
  %212 = vst [vmem:[%s211] ss:$2 sm:$0xff] %v31
  %v213 = vld.sshfl [vmem:[#allocation1] sm:$0xff pattern:$0x75316420]
  %v214 = vld.sshfl [vmem:[#allocation1 + $0x8] sm:$0xff pattern:$0x75316420]
  %v218 = vrot.slane %v66, 1
  %v219 = vrot.slane %v73, 1
  %v223 = vrot.slane %v82, 6
  %v224 = vrot.slane %v90, 6
  %v228 = vrot.slane %v99, 3
  %v229 = vrot.slane %v106, 3
  %v237 = vrot.slane %v132, 3
  %v238 = vrot.slane %v137, 3
  %v244 = vperm.slane %v39, 0
  %v245 = vperm.slane %v39, 2
  %v249 = vrot.slane %v156, 7
  %v250 = vrot.slane %v161, 7
  %vm253 = vcmask 1042432
  %v254 = vsel %vm253, %v187, %v194
  %v255 = vsel %vm253, %v188, %v195
  %vm256 = vcmask 1045504
  %v257 = vsel %vm256, %v254, %v199
  %v258 = vsel %vm256, %v255, %v200
  %vm259 = vcmask 1040384
  %v260 = vsel %vm259, %v199, %v206
  %v261 = vsel %vm259, %v200, %v207
  %vm262 = vcmask 1043456
  %v263 = vsel %vm262, %v260, %v213
  %v264 = vsel %vm262, %v261, %v214
  %vm265 = vcmask 1046528
  %v266 = vsel %vm265, %v263, %v218
  %v267 = vsel %vm265, %v264, %v219
  %vm268 = vcmask 1041408
  %v269 = vsel %vm268, %v218, %v223
  %v270 = vsel %vm268, %v219, %v224
  %vm271 = vcmask 1044480
  %v272 = vsel %vm271, %v269, %v228
  %v273 = vsel %vm271, %v270, %v229
  %v274 = vsel %vm253, %v115, %v126
  %v275 = vsel %vm253, %v124, %v127
  %v276 = vsel %vm262, %v274, %v163
  %v277 = vsel %vm262, %v275, %v164
  %v278 = vsel %vm271, %v276, %v237
  %v279 = vsel %vm271, %v277, %v238
  %v280 = vsel %vm256, %v278, %v139
  %v281 = vsel %vm256, %v279, %v140
  %v282 = vsel %vm265, %v280, %v244
  %v283 = vsel %vm265, %v281, %v245
  %v284 = vsel %vm259, %v145, %v249
  %v285 = vsel %vm259, %v151, %v250
  %v287 = vrot.slane %v180, 7
  %v288 = vrot.slane %v185, 7
  %v291 = vsel %vm259, %v169, %v287
  %v292 = vsel %vm259, %v175, %v288
  %v293 = vsel %vm268, %v291, 1.0
  %v294 = vsel %vm268, %v292, 1.0
  %v295 = vsel %vm253, %v293, 0.0
  %v296 = vsel %vm253, %v294, 0.0
  %v299 = vrot.slane %v295, 6
  %v300 = vrot.slane %v296, 6
  %v303 = vsel %vm268, %v284, %v299
  %v304 = vsel %vm268, %v285, %v300
  %v305 = vpack.c.bf16 %v266, %v257
  %v306 = vpack.c.bf16 %v267, %v258
  %v307 = vpack.c.bf16 %v282, %v272
  %v308 = vpack.c.bf16 %v283, %v273
  %v309 = vpack.c.bf16 %v303, %v303
  %v310 = vpack.c.bf16 %v304, %v304
  %v311 = vld [vmem:[%s2] sm:$0xf]
  %v312 = vld [vmem:[%s2 + $0x4] sm:$0xf]
  %v313 = vld [vmem:[%s2 + $0x8] sm:$0xf]
  %v314 = vld [vmem:[%s2 + $0xc] sm:$0xf]
  %v315 = vld [vmem:[%s2 + $0x10] sm:$0xf]
  %v316 = vld [vmem:[%s2 + $0x14] sm:$0xf]
  %v317 = vld [vmem:[%s2 + $0x18] sm:$0xf]
  %v318 = vld [vmem:[%s2 + $0x1c] sm:$0xf]
  %v327 = vunpack.c.l.b16 %v311
  %v328 = vunpack.c.l.b16 %v312
  %v329 = vunpack.c.l.b16 %v313
  %v330 = vunpack.c.l.b16 %v314
  %v331 = vunpack.c.l.b16 %v315
  %v332 = vunpack.c.l.b16 %v316
  %v333 = vunpack.c.l.b16 %v317
  %v334 = vunpack.c.l.b16 %v318
  %v335 = vpack.c.b16 %v328, %v327
  %v336 = vpack.c.b16 %v330, %v329
  %v337 = vpack.c.b16 %v332, %v331
  %v338 = vpack.c.b16 %v334, %v333
  %vm339 = vcmask 326656
  %v341 = vsel %vm339, %v335, 0
  %v344 = vsel %vm339, %v336, 0
  %v347 = vsel %vm339, %v337, 0
  %v350 = vsel %vm339, %v338, 0
  %v353 = vsel %vm262, %v309, 0
  %v356 = vsel %vm262, %v310, 0
  %358 = vmatpush.bf16.msra.mxu0 0
  %359 = vmatpush.bf16.msra.mxu0 0
  %360 = vmatpush.bf16.msra.mxu0 0
  %361 = vmatpush.bf16.msra.mxu0 0
  %362 = vmatpush.bf16.msra.mxu0 0
  %363 = vmatpush.bf16.msra.mxu0 %v353
  %364 = vmatpush.bf16.msra.mxu0 %v307
  %365 = vmatpush.bf16.msra.mxu0 %v305
  %366 = vmatmul.bf16.gmra.mxu0 %v341
  %v367 = vpop.f32.mrf.mxu0
  %v368 = vadd.f32 0.0, %v367
  %v369 = vpop.f32.mrf.mxu0
  %v370 = vadd.f32 0.0, %v369
  %371 = vmatmul.bf16.gmra.mxu0 %v344
  %v372 = vpop.f32.mrf.mxu0
  %v373 = vadd.f32 0.0, %v372
  %v374 = vpop.f32.mrf.mxu0
  %v375 = vadd.f32 0.0, %v374
  %376 = vmatmul.bf16.gmra.mxu0 %v347
  %v377 = vpop.f32.mrf.mxu0
  %v378 = vadd.f32 0.0, %v377
  %v379 = vpop.f32.mrf.mxu0
  %v380 = vadd.f32 0.0, %v379
  %381 = vmatmul.bf16.gmra.mxu0 %v350
  %v382 = vpop.f32.mrf.mxu0
  %v383 = vadd.f32 0.0, %v382
  %v384 = vpop.f32.mrf.mxu0
  %v385 = vadd.f32 0.0, %v384
  %386 = vdwg.mxu0
  %387 = vmatpush.bf16.msra.mxu0 0
  %388 = vmatpush.bf16.msra.mxu0 0
  %389 = vmatpush.bf16.msra.mxu0 0
  %390 = vmatpush.bf16.msra.mxu0 0
  %391 = vmatpush.bf16.msra.mxu0 0
  %392 = vmatpush.bf16.msra.mxu0 %v356
  %393 = vmatpush.bf16.msra.mxu0 %v308
  %394 = vmatpush.bf16.msra.mxu0 %v306
  %395 = vmatmul.bf16.gmra.mxu0 %v341
  %v396 = vpop.f32.mrf.mxu0
  %v397 = vadd.f32 0.0, %v396
  %v398 = vpop.f32.mrf.mxu0
  %v399 = vadd.f32 0.0, %v398
  %400 = vmatmul.bf16.gmra.mxu0 %v344
  %v401 = vpop.f32.mrf.mxu0
  %v402 = vadd.f32 0.0, %v401
  %v403 = vpop.f32.mrf.mxu0
  %v404 = vadd.f32 0.0, %v403
  %405 = vmatmul.bf16.gmra.mxu0 %v347
  %v406 = vpop.f32.mrf.mxu0
  %v407 = vadd.f32 0.0, %v406
  %v408 = vpop.f32.mrf.mxu0
  %v409 = vadd.f32 0.0, %v408
  %410 = vmatmul.bf16.gmra.mxu0 %v350
  %v411 = vpop.f32.mrf.mxu0
  %v412 = vadd.f32 0.0, %v411
  %v413 = vpop.f32.mrf.mxu0
  %v414 = vadd.f32 0.0, %v413
  %415 = vdwg.mxu0
  %v416 = vmax.f32 %v368, 0.0
  %v417 = vmax.f32 %v397, 0.0
  %v418 = vmax.f32 %v370, 0.0
  %v419 = vmax.f32 %v399, 0.0
  %v420 = vmax.f32 %v373, 0.0
  %v421 = vmax.f32 %v402, 0.0
  %v422 = vmax.f32 %v375, 0.0
  %v423 = vmax.f32 %v404, 0.0
  %v424 = vmax.f32 %v378, 0.0
  %v425 = vmax.f32 %v407, 0.0
  %v426 = vmax.f32 %v380, 0.0
  %v427 = vmax.f32 %v409, 0.0
  %v428 = vmax.f32 %v383, 0.0
  %v429 = vmax.f32 %v412, 0.0
  %v430 = vmax.f32 %v385, 0.0
  %v431 = vmax.f32 %v414, 0.0
  %v432 = vmul.f32 %v424, 0.7
  %v433 = vmul.f32 %v425, 0.7
  %v434 = vmul.f32 %v426, 0.7
  %v435 = vmul.f32 %v427, 0.7
  %v436 = vmul.f32 %v428, 0.7
  %v437 = vmul.f32 %v429, 0.7
  %v438 = vmul.f32 %v430, 0.7
  %v439 = vmul.f32 %v431, 0.7
  %v440 = vadd.f32 %v416, %v432
  %v441 = vadd.f32 %v417, %v433
  %v442 = vadd.f32 %v418, %v434
  %v443 = vadd.f32 %v419, %v435
  %v444 = vadd.f32 %v420, %v436
  %v445 = vadd.f32 %v421, %v437
  %v446 = vadd.f32 %v422, %v438
  %v447 = vadd.f32 %v423, %v439
  %v448 = vld [vmem:[%s3] sm:$0xf]
  %v449 = vpack.c.bf16 %v442, %v440
  %v450 = vpack.c.bf16 %v443, %v441
  %v451 = vpack.c.bf16 %v446, %v444
  %v452 = vpack.c.bf16 %v447, %v445
  %v453 = vld [vmem:[%s4] sm:$0xff]
  %v454 = vld [vmem:[%s4 + $0x8] sm:$0xff]
  %vm455 = vcmask 261120
  %v457 = vsel %vm455, %v448, 0
  %459 = vmatpush.bf16.msra.mxu0 0
  %460 = vmatpush.bf16.msra.mxu0 0
  %461 = vmatpush.bf16.msra.mxu0 0
  %462 = vmatpush.bf16.msra.mxu0 0
  %463 = vmatpush.bf16.msra.mxu0 0
  %464 = vmatpush.bf16.msra.mxu0 0
  %465 = vmatpush.bf16.msra.mxu0 %v451
  %466 = vmatpush.bf16.msra.mxu0 %v449
  %467 = vmatmul.bf16.gmra.mxu0 %v457
  %v468 = vpop.f32.mrf.mxu0
  %v469 = vadd.f32 %v453, %v468
  %v470 = vpop.f32.mrf.mxu0
  %471 = vdwg.mxu0
  %472 = vmatpush.bf16.msra.mxu0 0
  %473 = vmatpush.bf16.msra.mxu0 0
  %474 = vmatpush.bf16.msra.mxu0 0
  %475 = vmatpush.bf16.msra.mxu0 0
  %476 = vmatpush.bf16.msra.mxu0 0
  %477 = vmatpush.bf16.msra.mxu0 0
  %478 = vmatpush.bf16.msra.mxu0 %v452
  %479 = vmatpush.bf16.msra.mxu0 %v450
  %480 = vmatmul.bf16.gmra.mxu0 %v457
  %v481 = vpop.f32.mrf.mxu0
  %v482 = vadd.f32 %v454, %v481
  %v483 = vpop.f32.mrf.mxu0
  %484 = vdwg.mxu0
  %v485 = vld [vmem:[%s5] sm:$0xff]
  %v487 = vperm.slane %v485, 0
  %v488 = vperm.slane %v485, 4
  %v491 = vperm.slane %v487, 0
  %v492 = vperm.slane %v488, 0
  %v493 = vmul.f32 %v491, %v469
  %v494 = vmul.f32 %v492, %v482
  %v495 = vsub.f32 1.0, %v485
  %497 = vrot.lane.b32.xlu0 %v482, 103
  %v498 = vpop.permute.xlu0 %497
  %501 = vrot.lane.b32.xlu0 %v469, 9
  %v502 = vpop.permute.xlu0 %501
  %503 = vrot.lane.b32.xlu0 %v482, 9
  %v504 = vpop.permute.xlu0 %503
  %vm505 = vcmask 72704
  %v506 = vsel %vm505, %v502, %v504
  %v509 = vsel %vm505, %v498, %v502
  %v511 = vperm.slane %v495, 0
  %v512 = vperm.slane %v495, 4
  %v515 = vperm.slane %v511, 0
  %v516 = vperm.slane %v512, 0
  %v517 = vmul.f32 %v515, %v509
  %v518 = vmul.f32 %v516, %v506
  %v519 = vadd.f32 %v493, %v517
  %v520 = vadd.f32 %v494, %v518
  %v521 = vperm.slane %v485, 1
  %v522 = vperm.slane %v485, 5
  %v525 = vperm.slane %v521, 1
  %v526 = vperm.slane %v522, 1
  %v527 = vmul.f32 %v525, %v469
  %v528 = vmul.f32 %v526, %v482
  %529 = vrot.lane.b32.xlu0 %v469, 119
  %v530 = vpop.permute.xlu0 %529
  %531 = vrot.lane.b32.xlu0 %v482, 119
  %v532 = vpop.permute.xlu0 %531
  %v533 = vsel %vm81, %v530, %v532
  %536 = vrot.lane.b32.xlu0 %v469, 25
  %v537 = vpop.permute.xlu0 %536
  %v539 = vsel %vm89, %v532, %v537
  %v540 = vperm.slane %v495, 1
  %v541 = vperm.slane %v495, 5
  %v544 = vperm.slane %v540, 1
  %v545 = vperm.slane %v541, 1
  %v546 = vmul.f32 %v544, %v533
  %v547 = vmul.f32 %v545, %v539
  %v548 = vadd.f32 %v527, %v546
  %v549 = vadd.f32 %v528, %v547
  %v550 = vmul.f32 %v519, 0.25
  %v551 = vmul.f32 %v520, 0.25
  %v552 = vmul.f32 %v469, 0.75
  %v553 = vmul.f32 %v482, 0.75
  %v554 = vadd.f32 %v550, %v552
  %v555 = vadd.f32 %v551, %v553
  %v556 = vmul.f32 %v548, 0.25
  %v557 = vmul.f32 %v549, 0.25
  %v558 = vadd.f32 %v552, %v556
  %v559 = vadd.f32 %v553, %v557
  %v560 = vperm.slane %v485, 2
  %v561 = vperm.slane %v485, 6
  %v564 = vperm.slane %v560, 2
  %v565 = vperm.slane %v561, 2
  %v566 = vmul.f32 %v564, %v554
  %v567 = vmul.f32 %v565, %v555
  %569 = vrot.lane.b32.xlu0 %v555, 95
  %v570 = vpop.permute.xlu0 %569
  %573 = vrot.lane.b32.xlu0 %v554, 1
  %v574 = vpop.permute.xlu0 %573
  %575 = vrot.lane.b32.xlu0 %v555, 1
  %v576 = vpop.permute.xlu0 %575
  %vm577 = vcmask 7168
  %v578 = vsel %vm577, %v574, %v576
  %v581 = vsel %vm577, %v570, %v574
  %v582 = vperm.slane %v495, 2
  %v583 = vperm.slane %v495, 6
  %v586 = vperm.slane %v582, 2
  %v587 = vperm.slane %v583, 2
  %v588 = vmul.f32 %v586, %v581
  %v589 = vmul.f32 %v587, %v578
  %v590 = vadd.f32 %v566, %v588
  %v591 = vadd.f32 %v567, %v589
  %v592 = vperm.slane %v485, 3
  %v593 = vperm.slane %v485, 7
  %v596 = vperm.slane %v592, 3
  %v597 = vperm.slane %v593, 3
  %v598 = vmul.f32 %v596, %v554
  %v599 = vmul.f32 %v597, %v555
  %600 = vrot.lane.b32.xlu0 %v554, 127
  %v601 = vpop.permute.xlu0 %600
  %602 = vrot.lane.b32.xlu0 %v555, 127
  %v603 = vpop.permute.xlu0 %602
  %v604 = vsel %vm48, %v601, %v603
  %607 = vrot.lane.b32.xlu0 %v554, 33
  %v608 = vpop.permute.xlu0 %607
  %v610 = vsel %vm56, %v603, %v608
  %v611 = vperm.slane %v495, 3
  %v612 = vperm.slane %v495, 7
  %v615 = vperm.slane %v611, 3
  %v616 = vperm.slane %v612, 3
  %v617 = vmul.f32 %v615, %v604
  %v618 = vmul.f32 %v616, %v610
  %v619 = vadd.f32 %v598, %v617
  %v620 = vadd.f32 %v599, %v618
  %v621 = vmul.f32 %v590, 0.25
  %v622 = vmul.f32 %v591, 0.25
  %v623 = vmul.f32 %v554, 0.75
  %v624 = vmul.f32 %v555, 0.75
  %v625 = vadd.f32 %v621, %v623
  %v626 = vadd.f32 %v622, %v624
  %627 = vst [vmem:[%s6] sm:$0xff] %v625
  %vm628 = vcmask 277504
  %629 = vst.msk [vmem:[%s6 + $0x8] sm:$0xff] %vm628, %v626
  %v630 = vmul.f32 %v619, 0.25
  %v631 = vmul.f32 %v620, 0.25
  %v632 = vadd.f32 %v623, %v630
  %v633 = vadd.f32 %v624, %v631
  %s634 = scalar_lea.vmem %s6, 16
  %635 = vst [vmem:[%s634] sm:$0xff] %v632
  %636 = vst.msk [vmem:[%s634 + $0x8] sm:$0xff] %vm628, %v633
  %v637 = vmul.f32 %v564, %v558
  %v638 = vmul.f32 %v565, %v559
  %640 = vrot.lane.b32.xlu0 %v559, 95
  %v641 = vpop.permute.xlu0 %640
  %644 = vrot.lane.b32.xlu0 %v558, 1
  %v645 = vpop.permute.xlu0 %644
  %646 = vrot.lane.b32.xlu0 %v559, 1
  %v647 = vpop.permute.xlu0 %646
  %v648 = vsel %vm577, %v645, %v647
  %v651 = vsel %vm577, %v641, %v645
  %v652 = vmul.f32 %v586, %v651
  %v653 = vmul.f32 %v587, %v648
  %v654 = vadd.f32 %v637, %v652
  %v655 = vadd.f32 %v638, %v653
  %v656 = vmul.f32 %v596, %v558
  %v657 = vmul.f32 %v597, %v559
  %658 = vrot.lane.b32.xlu0 %v558, 127
  %v659 = vpop.permute.xlu0 %658
  %660 = vrot.lane.b32.xlu0 %v559, 127
  %v661 = vpop.permute.xlu0 %660
  %v662 = vsel %vm48, %v659, %v661
  %665 = vrot.lane.b32.xlu0 %v558, 33
  %v666 = vpop.permute.xlu0 %665
  %v668 = vsel %vm56, %v661, %v666
  %v669 = vmul.f32 %v615, %v662
  %v670 = vmul.f32 %v616, %v668
  %v671 = vadd.f32 %v656, %v669
  %v672 = vadd.f32 %v657, %v670
  %v673 = vmul.f32 %v654, 0.25
  %v674 = vmul.f32 %v655, 0.25
  %v675 = vmul.f32 %v558, 0.75
  %v676 = vmul.f32 %v559, 0.75
  %v677 = vadd.f32 %v673, %v675
  %v678 = vadd.f32 %v674, %v676
  %s679 = scalar_lea.vmem %s6, 32
  %680 = vst [vmem:[%s679] sm:$0xff] %v677
  %681 = vst.msk [vmem:[%s679 + $0x8] sm:$0xff] %vm628, %v678
  %v682 = vmul.f32 %v671, 0.25
  %v683 = vmul.f32 %v672, 0.25
  %v684 = vadd.f32 %v675, %v682
  %v685 = vadd.f32 %v676, %v683
  %s686 = scalar_lea.vmem %s6, 48
  %687 = vst [vmem:[%s686] sm:$0xff] %v684
  %688 = vst.msk [vmem:[%s686 + $0x8] sm:$0xff] %vm628, %v685
  // Predicated region
  $region26: #{_forward.1} parent=0 // pred_check
    _
  $region27: #{_forward.1} parent=0 // pred_check_branch
    %690 = sbr.rel (0) target = $region29
  $region28: #{_forward.1} parent=0 // pred_region
    _
  $region29: #{_forward.1} parent=0 // pred_fallthru
    _
  // Predicated region
  $region30: #{_forward.1} parent=0 // pred_check
    _
  $region31: #{_forward.1} parent=0 // pred_check_branch
    %692 = sbr.rel (0) target = $region33
  $region32: #{_forward.1} parent=0 // pred_region
    _
  $region33: #{_forward.1} parent=0 // pred_fallthru
    _

</llo_original>
